<compile_context>
chip_gen: v5e
topology: v5e:2x2
jax: 0.10.0
libtpu: 0.0.40
codegen_flags: <defaults>
</compile_context>

<pallas_src>
import jax
import jax.numpy as jnp
from jax import lax
from jax.experimental import pallas as pl
from jax.experimental.pallas import tpu as pltpu


def _logreg_kernel(x_ref, w_ref, b_ref, o_ref):
    # x_ref: (tm, K) row block       w_ref: (N, K) VMEM-resident
    # b_ref: (N, 1)  VMEM-resident   o_ref: (N, tm) transposed output block
    #
    # logits^T = W (N,K) . X^T  == dot_general contracting K of both operands
    # (flash-attention's q @ k^T pattern; lowers straight to the MXU).
    logits_t = lax.dot_general(
        w_ref[...], x_ref[...],
        dimension_numbers=(((1,), (1,)), ((), ())),
        preferred_element_type=jnp.float32)            # (N, tm)
    logits_t = logits_t + b_ref[...]                   # lane-broadcast bias

    # Numerically-stable softmax over the class axis (= sublanes here).
    mx = jnp.max(logits_t, axis=0, keepdims=True)      # (1, tm)
    e = jnp.exp(logits_t - mx)                         # (N, tm)
    denom = jnp.sum(e, axis=0, keepdims=True)          # (1, tm)
    o_ref[...] = (e / denom).astype(o_ref.dtype)       # exact normalizer


def _choose_tm(m, tm_max=16384, min_steps=4):
    """Large row tile (amortize per-step overhead) while keeping >= min_steps
    grid steps when m allows (so both v7x TensorCores can still pipeline under
    dimension_semantics=('parallel',)).  The transposed output block puts rows
    on the lane axis, so any tile smaller than the full extent must be a
    multiple of 128."""
    tm = min(tm_max, -(-m // min_steps))          # cdiv(m, min_steps), capped
    tm = ((tm + 127) // 128) * 128                # lane multiple
    if tm >= m:
        return m                                  # single full-extent block
    return tm


def logistic_regression_forward(x, weight, bias, *, tm=None):
    """x: (d1, d2, input_dim); weight: (output_dim, input_dim); bias: (output_dim,)."""
    d1, d2, k = x.shape
    n = weight.shape[0]
    m = d1 * d2

    x2d = x.reshape(m, k)           # free (row-major view), no extra HBM pass
    w_nk = weight                   # (N, K) -- PyTorch Linear layout, as-is
    b_n1 = bias.reshape(n, 1)       # (N, 1), broadcasts along lanes in-kernel

    if tm is None:
        tm = _choose_tm(m)
    if tm >= m:
        tm = m                      # full-extent block: any m is legal
    else:
        tm = max(128, (tm // 128) * 128)  # lane-axis blocks must be 128-multiples
        tm = min(tm, m)

    grid = pl.cdiv(m, tm)           # ragged last block handled by masked DMA

    cost = pl.CostEstimate(
        flops=2 * m * k * n,
        transcendentals=m * n,
        bytes_accessed=4 * (m * k + n * k + n + n * m),
    )

    out_t = pl.pallas_call(
        _logreg_kernel,
        out_shape=jax.ShapeDtypeStruct((n, m), x.dtype),   # transposed output
        grid_spec=pltpu.PrefetchScalarGridSpec(
            num_scalar_prefetch=0,
            grid=(grid,),
            in_specs=[
                pl.BlockSpec((tm, k), lambda i: (i, 0)),
                # Pipeline-invariant params: whole arrays resident in VMEM
                # (no per-step double buffer, no re-DMA across grid steps).
                pl.BlockSpec(memory_space=pltpu.MemorySpace.VMEM),
                pl.BlockSpec(memory_space=pltpu.MemorySpace.VMEM),
            ],
            out_specs=pl.BlockSpec((n, tm), lambda i: (0, i)),
        ),
        compiler_params=pltpu.CompilerParams(
            dimension_semantics=("parallel",),
            # ~6 MiB actually used at tm=16384; 32 MiB is safe on every
            # generation (v5e/v6e 128 MiB physical, v7x 64 MiB physical).
            vmem_limit_bytes=32 * 1024 * 1024,
        ),
        cost_estimate=cost,
    )(x2d, w_nk, b_n1)

    # Un-transpose the small (N, M) output back to (d1, d2, N).
    return out_t.T.reshape(d1, d2, n)


def _reference(x, weight, bias):
    d1, d2, k = x.shape
    x2d = x.reshape(-1, k)
    logits = jnp.dot(x2d, weight.T, precision=lax.Precision.HIGHEST) + bias
    return jax.nn.softmax(logits, axis=1).reshape(d1, d2, weight.shape[0])


if __name__ == "__main__":
    # output_dim must be 10: the PyTorch forward hard-codes .view(d1, d2, 10).
    input_dim, output_dim = 32, 10

    key = jax.random.PRNGKey(0)
    kx, kw, kb, kx2 = jax.random.split(key, 4)

    # Deterministic parameter init (mimics nn.Linear's uniform(-1/sqrt(K), 1/sqrt(K))).
    bound = 1.0 / (input_dim ** 0.5)
    weight = jax.random.uniform(kw, (output_dim, input_dim),
                                minval=-bound, maxval=bound, dtype=jnp.float32)
    bias = jax.random.uniform(kb, (output_dim,),
                              minval=-bound, maxval=bound, dtype=jnp.float32)

    # Case 1: small (m=16 rows -> single full-extent block).
    d1, d2 = 2, 8
    x = jax.random.normal(kx, (d1, d2, input_dim), dtype=jnp.float32)
    out = jax.block_until_ready(logistic_regression_forward(x, weight, bias))
    ref = _reference(x, weight, bias)
    assert out.shape == (d1, d2, output_dim)
    assert jnp.allclose(out, ref, atol=1e-3, rtol=1e-3)
    assert jnp.allclose(jnp.sum(out, axis=-1), 1.0, atol=1e-3)

    # Case 2: m=520 rows, tm=256 -> 3 grid steps with a ragged last block
    # (exercises the no-pad masked-edge path).
    d1b, d2b = 4, 130
    xb = jax.random.normal(kx2, (d1b, d2b, input_dim), dtype=jnp.float32)
    outb = jax.block_until_ready(logistic_regression_forward(xb, weight, bias))
    refb = _reference(xb, weight, bias)
    assert outb.shape == (d1b, d2b, output_dim)
    assert jnp.allclose(outb, refb, atol=1e-3, rtol=1e-3)
    assert jnp.allclose(jnp.sum(outb, axis=-1), 1.0, atol=1e-3)

    print("KERNEL_OK")
</pallas_src>

<mosaic_0001>
module attributes {stable_mosaic.version = 11 : i64} {
  func.func @_logreg_kernel(%arg0: i32, %arg1: memref<16x32xf32, #tpu.memory_space<vmem>>, %arg2: memref<10x32xf32, #tpu.memory_space<vmem>>, %arg3: memref<10x1xf32, #tpu.memory_space<vmem>>, %arg4: memref<10x16xf32, #tpu.memory_space<vmem>>) attributes {dimension_semantics = [#tpu.dimension_semantics<parallel>], iteration_bounds = array<i64: 1>, scalar_prefetch = 0 : i64, scratch_operands = 0 : i64, tpu.core_type = #tpu.core_type<tc>, window_params = [{transform_indices = @transform_0, window_bounds = array<i64: 16, 32>}, {pipeline_mode = #tpu.pipeline_mode<synchronous>, transform_indices = @transform_1, window_bounds = array<i64: 10, 32>}, {pipeline_mode = #tpu.pipeline_mode<synchronous>, transform_indices = @transform_2, window_bounds = array<i64: 10, 1>}, {transform_indices = @transform_3, window_bounds = array<i64: 10, 16>}]} {
    %c0 = arith.constant 0 : index
    %c0_0 = arith.constant 0 : index
    %0 = vector.load %arg2[%c0, %c0_0] : memref<10x32xf32, #tpu.memory_space<vmem>>, vector<10x32xf32>
    %c0_1 = arith.constant 0 : index
    %c0_2 = arith.constant 0 : index
    %1 = vector.load %arg1[%c0_1, %c0_2] : memref<16x32xf32, #tpu.memory_space<vmem>>, vector<16x32xf32>
    %cst = arith.constant dense<0.000000e+00> : vector<10x16xf32>
    %2 = tpu.matmul %0, %1, %cst {dimension_numbers = #tpu.dot_dimension_numbers<[1], [1], [0], [0], [0, 0, 1, 0], [], []>} : vector<10x32xf32>, vector<16x32xf32>, vector<10x16xf32> -> vector<10x16xf32>
    %c0_3 = arith.constant 0 : index
    %c0_4 = arith.constant 0 : index
    %3 = vector.load %arg3[%c0_3, %c0_4] : memref<10x1xf32, #tpu.memory_space<vmem>>, vector<10x1xf32>
    %4 = vector.broadcast %3 : vector<10x1xf32> to vector<10x16xf32>
    %5 = arith.addf %2, %4 : vector<10x16xf32>
    %cst_5 = arith.constant dense<0xFF800000> : vector<16xf32>
    %6 = vector.multi_reduction <maximumf>, %5, %cst_5 [0] : vector<10x16xf32> to vector<16xf32>
    %7 = vector.shape_cast %6 : vector<16xf32> to vector<1x16xf32>
    %8 = vector.broadcast %7 : vector<1x16xf32> to vector<10x16xf32>
    %9 = arith.subf %5, %8 : vector<10x16xf32>
    %10 = math.exp %9 : vector<10x16xf32>
    %cst_6 = arith.constant dense<0.000000e+00> : vector<16xf32>
    %11 = vector.multi_reduction <add>, %10, %cst_6 [0] : vector<10x16xf32> to vector<16xf32>
    %12 = vector.shape_cast %11 : vector<16xf32> to vector<1x16xf32>
    %13 = vector.broadcast %12 : vector<1x16xf32> to vector<10x16xf32>
    %14 = arith.divf %10, %13 : vector<10x16xf32>
    %c0_7 = arith.constant 0 : index
    %c0_8 = arith.constant 0 : index
    %15 = vector.load %arg4[%c0_7, %c0_8] : memref<10x16xf32, #tpu.memory_space<vmem>>, vector<10x16xf32>
    tpu.vector_store %arg4[%c0_7, %c0_8], %14 {strides = array<i32>} : memref<10x16xf32, #tpu.memory_space<vmem>>, vector<10x16xf32>,
    return
  }
  func.func @transform_0(%arg0: i32) -> (i32, i32) {
    %c0_i32 = arith.constant 0 : i32
    %c0_i32_0 = arith.constant 0 : i32
    return %arg0, %c0_i32 : i32, i32
  }
  func.func @transform_1(%arg0: i32) -> (i32, i32) {
    %c0_i32 = arith.constant 0 : i32
    %c0_i32_0 = arith.constant 0 : i32
    %c0_i32_1 = arith.constant 0 : i32
    return %c0_i32, %c0_i32_0 : i32, i32
  }
  func.func @transform_2(%arg0: i32) -> (i32, i32) {
    %c0_i32 = arith.constant 0 : i32
    %c0_i32_0 = arith.constant 0 : i32
    %c0_i32_1 = arith.constant 0 : i32
    return %c0_i32, %c0_i32_0 : i32, i32
  }
  func.func @transform_3(%arg0: i32) -> (i32, i32) {
    %c0_i32 = arith.constant 0 : i32
    %c0_i32_0 = arith.constant 0 : i32
    return %c0_i32, %arg0 : i32, i32
  }
}

</mosaic_0001>

<llo_original>
// kernel: tpu_custom_call.1
$region0: #{tpu_custom_call.1}
  #allocation0 [shape = 'u32[]', space=smem, size = 0x4, offset = 0x4, fixed_abs, tag = 'smem constant byte address 0x4 - core index']
  #allocation1 [shape = 'u32[72,128]{1,0:T(1,128)}', space=vmem, size = 0x9000, scoped, tag = 'internal scratch']
  %s0 = inlined_call_operand.vmem [shape: f32[16,32], index: 0, kind: input, shape index: {}]
  %s1 = inlined_call_operand.hbm [shape: f32[10,32], index: 1, kind: input, shape index: {}]
  %s2 = inlined_call_operand.vmem [shape: f32[10,1], index: 2, kind: input, shape index: {}]
  %s3 = inlined_call_operand.hbm [shape: f32[10,16], index: 3, kind: output, shape index: {}]
  %s4 = sld [smem:[#allocation0]]
  $region26: #{tpu_custom_call.1} parent=0
    _
  %s6 = ssub.s32 1, %s4
  %s7 = scalar_select 0, %s6, %s4
  $region1: #{tpu_custom_call.1} parent=0
    #allocation2 [shape = 'u8[8192]{0}', space=vmem, size = 0x2000, scoped, tag = 'input window, operand 1, single buffered']
    #allocation3 [shape = 's32[1]{0}', space=sflag, size = 0x4, scoped, tag = 'scoped memory for tpu_custom_call.1']
    #allocation4 [shape = 's32[1]{0}', space=sflag, size = 0x4, scoped, tag = 'scoped memory for tpu_custom_call.1']
    #allocation5 [shape = 'u8[8192]{0}', space=vmem, size = 0x2000, scoped, tag = 'output window, operand 0, single buffered']
    %8 = vsyncpa [#allocation3], 0
    %9 = vsyncpa [#allocation4], 0
    // Predicated region
    $region2: #{tpu_custom_call.1} parent=1 // pred_check
      _
    $region3: #{tpu_custom_call.1} parent=1 // pred_check_branch
      %11 = sbr.rel (0) target = $region5
    $region4: #{tpu_custom_call.1} parent=1 // pred_region
      _
    $region5: #{tpu_custom_call.1} parent=1 // pred_fallthru
      _
    // Predicated region
    $region6: #{tpu_custom_call.1} parent=1 // pred_check
      _
    $region7: #{tpu_custom_call.1} parent=1 // pred_check_branch
      %13 = sbr.rel (0) target = $region9
    $region8: #{tpu_custom_call.1} parent=1 // pred_region
      %15 = vsyncadd [#allocation3], 0
      %s16 = sshll.u32 %s1, 4
      %s17 = int_to_ptr.hbm [resolvable:$true] %s16
      %s18 = sshll.u32 [#allocation2], 4
      %s19 = int_to_ptr.vmem [resolvable:$true] %s18
      %24 = dma.hbm_to_vmem [thread:$0]  %s17, 256, %s19, [#allocation3], 128, 128, 8
    $region9: #{tpu_custom_call.1} parent=1 // pred_fallthru
      _
    // Predicated region
    $region10: #{tpu_custom_call.1} parent=1 // pred_check
      _
    $region11: #{tpu_custom_call.1} parent=1 // pred_check_branch
      %26 = sbr.rel (0) target = $region13
    $region12: #{tpu_custom_call.1} parent=1 // pred_region
      _
    $region13: #{tpu_custom_call.1} parent=1 // pred_fallthru
      _
    // Predicated region
    $region14: #{tpu_custom_call.1} parent=1 // pred_check
      _
    $region15: #{tpu_custom_call.1} parent=1 // pred_check_branch
      %28 = sbr.rel (0) target = $region17
    $region16: #{tpu_custom_call.1} parent=1 // pred_region
      %30 = dma.done [#allocation3], 256
    $region17: #{tpu_custom_call.1} parent=1 // pred_fallthru
      _
    %v31 = vld [vmem:[#allocation2] sm:$0xff]
    %v32 = vld [vmem:[#allocation2 + $0x8] sm:$0x3]
    %v33 = vld [vmem:[%s0] sm:$0xff]
    %v34 = vld [vmem:[%s0 + $0x8] sm:$0xff]
    %v35 = vld [vmem:[%s2] sm:$0xff]
    %v36 = vld [vmem:[%s2 + $0x8] sm:$0x3]
    %38 = vset.pattern.permute.xlu0 0
    %39 = vperm.xlu0 %38, %v35
    %v40 = vpop.permute.xlu0 %39
    %43 = vset.pattern.permute.xlu0 0
    %44 = vperm.xlu0 %43, %v36
    %v45 = vpop.permute.xlu0 %44
    %vm47 = vcmask 261120
    %v49 = vsel %vm47, %v31, 0
    %v52 = vsel %vm47, %v32, 0
    %v55 = vsel %vm47, %v33, 0
    %v58 = vsel %vm47, %v34, 0
    %60 = vmatpush.xpose.msra.mxu0 0.0
    %61 = vmatpush.xpose.msra.mxu0 0.0
    %62 = vmatpush.xpose.msra.mxu0 0.0
    %63 = vmatpush.xpose.msra.mxu0 0.0
    %64 = vmatpush.xpose.msra.mxu0 0.0
    %65 = vmatpush.xpose.msra.mxu0 0.0
    %66 = vmatpush.xpose.msra.mxu0 0.0
    %67 = vmatpush.xpose.msra.mxu0 0.0
    %68 = vmatpush.xpose.msra.mxu0 0.0
    %69 = vmatpush.xpose.msra.mxu0 0.0
    %70 = vmatpush.xpose.msra.mxu0 0.0
    %71 = vmatpush.xpose.msra.mxu0 0.0
    %72 = vmatpush.xpose.msra.mxu0 0.0
    %73 = vmatpush.xpose.msra.mxu0 0.0
    %74 = vmatpush.xpose.msra.mxu0 %v58
    %75 = vmatpush.xpose.msra.mxu0 %v55
    %76 = vmatmul.f32.gmra.mxu0 %v49
    %v77 = vpop.f32.mrf.mxu0
    %v78 = vadd.f32 %v40, %v77
    %79 = vmatmul.f32.gmra.mxu0 %v52
    %v80 = vpop.f32.mrf.mxu0
    %v81 = vadd.f32 %v45, %v80
    %82 = vdwg.mxu0
    %vm83 = vcmask 130048
    %v84 = vsel %vm83, %v78, -inf
    %vm85 = vcmask 123904
    %v86 = vsel %vm85, %v81, -inf
    %v87 = vmax.f32 %v84, %v86
    %v88 = vrot.slane %v87, 4
    %v89 = vmax.f32 %v87, %v88
    %v90 = vrot.slane %v89, 2
    %v91 = vmax.f32 %v89, %v90
    %v92 = vrot.slane %v91, 1
    %v93 = vmax.f32 %v91, %v92
    %v94 = vsub.f32 %v78, %v93
    %v95 = vsub.f32 %v81, %v93
    %v96 = vmul.f32 %v94, 1.442695
    %v97 = vpow.pop %v96
    %v98 = vmul.f32 %v95, 1.442695
    %v99 = vpow.pop %v98
    %v100 = vsel %vm83, %v97, 0.0
    %v101 = vsel %vm85, %v99, 0.0
    %v102 = vadd.f32 %v100, %v101
    %v103 = vrot.slane %v102, 4
    %v104 = vadd.f32 %v102, %v103
    %v105 = vrot.slane %v104, 2
    %v106 = vadd.f32 %v104, %v105
    %v107 = vrot.slane %v106, 1
    %v108 = vadd.f32 %v106, %v107
    %v109 = vrcp.pop %v108
    %v110 = vmul.f32 %v108, %v109
    %v111 = vsub.f32 1.0, %v110
    %v112 = vmul.f32 %v109, %v111
    %v113 = vadd.f32 %v109, %v112
    %vm114 = vweird.f32 %v108
    %vm115 = vweird.f32 %v109
    %vm116 = vmor %vm114, %vm115
    %v117 = vsel %vm116, %v109, %v113
    %v118 = vand.u32 2147483647, %v108
    %vm119 = vcmp.eq.f32.partialorder %v118, 8.507059e+37
    %v120 = vand.u32 %v108, 2147483648
    %v121 = vor.u32 1.1754944e-38, %v120
    %v122 = vsel %vm119, %v121, %v117
    %v123 = vmul.f32 %v97, %v122
    %v124 = vmul.f32 %v99, %v122
    %125 = vst.msk [vmem:[#allocation5] sm:$0xff] %vm83, %v123
    %126 = vst.msk [vmem:[#allocation5 + $0x8] sm:$0x3] %vm85, %v124
    // Predicated region
    $region18: #{tpu_custom_call.1} parent=1 // pred_check
      _
    $region19: #{tpu_custom_call.1} parent=1 // pred_check_branch
      %128 = sbr.rel (0) target = $region21
    $region20: #{tpu_custom_call.1} parent=1 // pred_region
      %130 = vsyncadd [#allocation4], 0
      %s131 = sshll.u32 [#allocation5], 4
      %s132 = int_to_ptr.vmem [resolvable:$true] %s131
      %s133 = sshll.u32 %s3, 4
      %s134 = int_to_ptr.hbm [resolvable:$true] %s133
      %139 = dma.vmem_to_hbm [thread:$0]  %s132, 256, %s134, [#allocation4], 128, 128, 8
    $region21: #{tpu_custom_call.1} parent=1 // pred_fallthru
      _
    // Predicated region
    $region22: #{tpu_custom_call.1} parent=1 // pred_check
      _
    $region23: #{tpu_custom_call.1} parent=1 // pred_check_branch
      %141 = sbr.rel (0) target = $region25
    $region24: #{tpu_custom_call.1} parent=1 // pred_region
      %143 = dma.done [#allocation4], 256
    $region25: #{tpu_custom_call.1} parent=1 // pred_fallthru
      _
    %144 = vsyncpa [#allocation3], 1
    %145 = vsyncpa [#allocation4], 1

</llo_original>
